<compile_context>
chip_gen: v5e
topology: v5e:2x2
jax: 0.10.0
libtpu: 0.0.40
codegen_flags: <defaults>
</compile_context>

<pallas_src>
import functools

import jax
import jax.numpy as jnp
from jax import lax
from jax.experimental import pallas as pl
from jax.experimental.pallas import tpu as pltpu


# ---------------------------------------------------------------------------
# Kernels
# ---------------------------------------------------------------------------

def _kv_proj_kernel(x_ref, wk_ref, wv_ref, bk_ref, bv_ref, k_ref, v_ref,
                    *, compute_dtype):
    """Project one row-block of x to K and V (computed exactly once per row)."""
    xb = x_ref[...].astype(compute_dtype)                                   # (tr, D)
    k = jnp.dot(xb, wk_ref[...], preferred_element_type=jnp.float32) + bk_ref[...]
    v = jnp.dot(xb, wv_ref[...], preferred_element_type=jnp.float32) + bv_ref[...]
    k_ref[...] = k.astype(k_ref.dtype)                                      # (tr, H)
    v_ref[...] = v.astype(v_ref.dtype)


def _attention_kernel(xq_ref, k_ref, v_ref,
                      wq_ref, bq_ref, wfc_ref, bfc_ref,
                      out_ref,
                      q_scr, m_scr, l_scr, acc_scr,
                      *, compute_dtype):
    # xq_ref : (tq, D)  query-row block of x (also the residual)
    # k_ref  : (tk, H)  precomputed K tile      v_ref: (tk, H) precomputed V tile
    # wq_ref : (D, H)   (already scaled by 1/temperature)   bq_ref: (1, H)
    # wfc_ref: (H, D)   bfc_ref: (1, D)
    # out_ref: (tq, D)  lane-dense in D
    kv_idx = pl.program_id(2)
    num_kv = pl.num_programs(2)

    @pl.when(kv_idx == 0)
    def _init():
        # Project the query block once per (batch, q-block); reused across kv steps.
        xq = xq_ref[...].astype(compute_dtype)                              # (tq, D)
        q = jnp.dot(xq, wq_ref[...], preferred_element_type=jnp.float32)
        q = q + bq_ref[...]                                                 # (tq, H) f32
        q_scr[...] = q.astype(compute_dtype)
        m_scr[...] = jnp.full(m_scr.shape, -jnp.inf, dtype=m_scr.dtype)
        l_scr[...] = jnp.zeros(l_scr.shape, dtype=l_scr.dtype)
        acc_scr[...] = jnp.zeros(acc_scr.shape, dtype=acc_scr.dtype)

    # Scores: contract last dims directly -> no explicit k.T transpose.
    # 1/temperature is already folded into Wq / bq.
    s = lax.dot_general(q_scr[...], k_ref[...],
                        dimension_numbers=(((1,), (1,)), ((), ())),
                        preferred_element_type=jnp.float32)                 # (tq, tk)

    # Online softmax update (f32 vector math).
    m_prev = m_scr[...]
    m_new = jnp.maximum(m_prev, jnp.max(s, axis=-1, keepdims=True))
    alpha = jnp.exp(m_prev - m_new)
    p = jnp.exp(s - m_new)                                                  # (tq, tk) f32
    l_scr[...] = alpha * l_scr[...] + jnp.sum(p, axis=-1, keepdims=True)
    acc_scr[...] = alpha * acc_scr[...] + jnp.dot(
        p.astype(compute_dtype), v_ref[...], preferred_element_type=jnp.float32)
    m_scr[...] = m_new

    @pl.when(kv_idx == num_kv - 1)
    def _finalize():
        # Dropout(p=0.1) treated as identity (inference mode).
        attn_out = acc_scr[...] * pl.reciprocal(l_scr[...], approx=False)   # (tq, H)
        out = jnp.dot(attn_out.astype(compute_dtype), wfc_ref[...],
                      preferred_element_type=jnp.float32)
        out = out + bfc_ref[...] + xq_ref[...]                              # residual (f32)
        out_ref[...] = out.astype(out_ref.dtype)


# ---------------------------------------------------------------------------
# Wrapper
# ---------------------------------------------------------------------------

def _pick_block(size, preferred=256):
    for cand in (preferred, 256, 128, 64, 32, 16, 8):
        if cand <= size and size % cand == 0:
            return cand
    return size


def _const_spec(block_shape, index_map):
    """BlockSpec for operands whose block index never changes.

    Buffered(1): no double-buffering for constants (saves VMEM). Falls back to
    a plain spec if this JAX build lacks the pipeline_mode kwarg.
    """
    try:
        return pl.BlockSpec(block_shape, index_map, pipeline_mode=pl.Buffered(1))
    except TypeError:  # older signature without pipeline_mode
        return pl.BlockSpec(block_shape, index_map)


def _vmem_hint(est_bytes):
    """Scoped-VMEM hint: estimate + headroom, clamped to sane bounds."""
    limit = int(est_bytes) + max(int(est_bytes) // 4, 2 << 20)   # >=25% / 2MiB headroom
    limit = max(limit, 16 << 20)
    limit = min(limit, 112 << 20)
    return limit


def attention_forward(x, w_qkv_t, b_qkv, w_fc_t, b_fc, *,
                      model_dim, hidden_dim,
                      block_q=None, block_k=None,
                      compute_dtype=jnp.bfloat16,
                      vmem_limit_bytes=None):
    """x: [B, S, D] -> [B, D, S]  (matches torch.permute(output, [0, 2, 1]))."""
    B, S, D = x.shape
    assert D == model_dim
    H = hidden_dim
    inv_temp = 1.0 / (float(model_dim) ** 0.5)

    if block_q is None:
        block_q = _pick_block(S)
    if block_k is None:
        block_k = _pick_block(S)
    assert S % block_q == 0 and S % block_k == 0
    num_q = S // block_q
    num_kv = S // block_k

    # Split the fused QKV weight/bias once in the wrapper; fold 1/temperature
    # into the Q projection in f32 BEFORE any bf16 cast (no double rounding).
    w_q_t, w_k_t, w_v_t = jnp.split(w_qkv_t.astype(jnp.float32), 3, axis=-1)   # (D, H) each
    b_q, b_k, b_v = jnp.split(b_qkv.astype(jnp.float32).reshape(1, 3 * H), 3, axis=-1)
    w_q_t = w_q_t * inv_temp
    b_q = b_q * inv_temp
    b_fc2 = b_fc.astype(jnp.float32).reshape(1, D)

    # MXU operands in compute_dtype (bf16 by default); biases & accumulation stay f32.
    w_q_c = w_q_t.astype(compute_dtype)
    w_k_c = w_k_t.astype(compute_dtype)
    w_v_c = w_v_t.astype(compute_dtype)
    w_fc_c = w_fc_t.astype(compute_dtype)

    cbytes = jnp.dtype(compute_dtype).itemsize
    xbytes = x.dtype.itemsize

    # ---------------- K/V projection (once per row, stored bf16) ----------------
    block_r = block_k
    const2 = lambda b, i: (0, 0)
    proj_est = (2 * block_r * D * xbytes          # x tile (double-buffered)
                + 2 * 2 * D * H * cbytes          # Wk, Wv (conservative x2)
                + 2 * 2 * H * 4                   # bk, bv
                + 2 * 2 * block_r * H * cbytes)   # K, V output tiles
    proj_vmem = vmem_limit_bytes or _vmem_hint(proj_est)

    k_proj, v_proj = pl.pallas_call(
        functools.partial(_kv_proj_kernel, compute_dtype=compute_dtype),
        out_shape=(jax.ShapeDtypeStruct((B, S, H), compute_dtype),
                   jax.ShapeDtypeStruct((B, S, H), compute_dtype)),
        grid_spec=pltpu.PrefetchScalarGridSpec(
            num_scalar_prefetch=0,
            grid=(B, S // block_r),
            in_specs=[
                pl.BlockSpec((None, block_r, D), lambda b, i: (b, i, 0)),  # x rows
                _const_spec((D, H), const2),   # Wk
                _const_spec((D, H), const2),   # Wv
                _const_spec((1, H), const2),   # bk
                _const_spec((1, H), const2),   # bv
            ],
            out_specs=[
                pl.BlockSpec((None, block_r, H), lambda b, i: (b, i, 0)),
                pl.BlockSpec((None, block_r, H), lambda b, i: (b, i, 0)),
            ],
        ),
        compiler_params=pltpu.CompilerParams(
            dimension_semantics=("parallel", "parallel"),
            vmem_limit_bytes=proj_vmem),
    )(x, w_k_c, w_v_c, b_k, b_v)

    # ---------------- Flash-style attention + fc + residual ----------------
    const3 = lambda b, qi, ki: (0, 0)
    attn_est = (2 * block_q * D * xbytes          # xq tile
                + 2 * 2 * block_k * H * cbytes    # K, V tiles
                + 2 * D * H * cbytes              # Wq (conservative x2)
                + 2 * H * 4                       # bq
                + 2 * H * D * cbytes              # W_fc
                + 2 * D * 4                       # b_fc
                + 2 * block_q * D * xbytes        # out tile
                + block_q * H * cbytes            # q scratch
                + 2 * block_q * 4                 # m, l
                + block_q * H * 4)                # acc
    attn_vmem = vmem_limit_bytes or _vmem_hint(attn_est)

    out_sd = pl.pallas_call(
        functools.partial(_attention_kernel, compute_dtype=compute_dtype),
        out_shape=jax.ShapeDtypeStruct((B, S, D), x.dtype),
        grid_spec=pltpu.PrefetchScalarGridSpec(
            num_scalar_prefetch=0,
            grid=(B, num_q, num_kv),
            in_specs=[
                pl.BlockSpec((None, block_q, D), lambda b, qi, ki: (b, qi, 0)),  # x (q rows / residual)
                pl.BlockSpec((None, block_k, H), lambda b, qi, ki: (b, ki, 0)),  # K tile
                pl.BlockSpec((None, block_k, H), lambda b, qi, ki: (b, ki, 0)),  # V tile
                _const_spec((D, H), const3),   # Wq (pre-scaled)
                _const_spec((1, H), const3),   # bq (pre-scaled)
                _const_spec((H, D), const3),   # W_fc
                _const_spec((1, D), const3),   # b_fc
            ],
            out_specs=pl.BlockSpec((None, block_q, D), lambda b, qi, ki: (b, qi, 0)),
            scratch_shapes=[
                pltpu.VMEM((block_q, H), compute_dtype),   # projected q block
                pltpu.VMEM((block_q, 1), jnp.float32),     # running max  m
                pltpu.VMEM((block_q, 1), jnp.float32),     # running sum  l
                pltpu.VMEM((block_q, H), jnp.float32),     # output accumulator
            ],
        ),
        compiler_params=pltpu.CompilerParams(
            dimension_semantics=("parallel", "parallel", "arbitrary"),
            vmem_limit_bytes=attn_vmem),
    )(x, k_proj, v_proj, w_q_c, b_q, w_fc_c, b_fc2)

    # Final [0, 2, 1] permute in XLA: keeps kernel stores lane-dense in D.
    return jnp.transpose(out_sd, (0, 2, 1))


# ---------------------------------------------------------------------------
# Reference & params
# ---------------------------------------------------------------------------

def attention_reference(x, w_qkv_t, b_qkv, w_fc_t, b_fc, *, model_dim):
    """Pure-JAX reference mirroring the PyTorch forward (eval-mode dropout)."""
    temperature = float(model_dim) ** 0.5
    qkv = x @ w_qkv_t + b_qkv
    q, k, v = jnp.split(qkv, 3, axis=-1)
    attn = jnp.einsum("bqh,bkh->bqk", q, k) / temperature
    attn = jax.nn.softmax(attn, axis=-1)
    out = jnp.einsum("bqk,bkh->bqh", attn, v)
    out = out @ w_fc_t + b_fc + x
    return jnp.transpose(out, (0, 2, 1))


def init_params(key, model_dim, hidden_dim):
    """Deterministic init mimicking nn.Linear default (uniform +-1/sqrt(fan_in))."""
    k1, k2, k3, k4 = jax.random.split(key, 4)
    bound1 = 1.0 / (model_dim ** 0.5)
    bound2 = 1.0 / (hidden_dim ** 0.5)
    w_qkv_t = jax.random.uniform(k1, (model_dim, 3 * hidden_dim),
                                 minval=-bound1, maxval=bound1, dtype=jnp.float32)
    b_qkv = jax.random.uniform(k2, (3 * hidden_dim,),
                               minval=-bound1, maxval=bound1, dtype=jnp.float32)
    w_fc_t = jax.random.uniform(k3, (hidden_dim, model_dim),
                                minval=-bound2, maxval=bound2, dtype=jnp.float32)
    b_fc = jax.random.uniform(k4, (model_dim,),
                              minval=-bound2, maxval=bound2, dtype=jnp.float32)
    return w_qkv_t, b_qkv, w_fc_t, b_fc


if __name__ == "__main__":
    batch, seq, model_dim, hidden_dim = 2, 16, 32, 16

    key = jax.random.PRNGKey(0)
    kx, kp = jax.random.split(key)
    x = jax.random.normal(kx, (batch, seq, model_dim), dtype=jnp.float32)
    w_qkv_t, b_qkv, w_fc_t, b_fc = init_params(kp, model_dim, hidden_dim)

    ref = attention_reference(x, w_qkv_t, b_qkv, w_fc_t, b_fc, model_dim=model_dim)

    # f32-operand path with small blocks (exercises multi-block online softmax);
    # tight check against the reference.
    out_f32 = attention_forward(x, w_qkv_t, b_qkv, w_fc_t, b_fc,
                                model_dim=model_dim, hidden_dim=hidden_dim,
                                block_q=8, block_k=8,
                                compute_dtype=jnp.float32)
    out_f32 = jax.block_until_ready(out_f32)
    assert out_f32.shape == (batch, model_dim, seq), out_f32.shape
    err_f32 = jnp.max(jnp.abs(out_f32 - ref))
    assert jnp.allclose(out_f32, ref, atol=2e-3, rtol=2e-3), f"f32 max abs err = {err_f32}"

    # Default bf16-MXU path (f32 accumulate), default block sizes: looser tolerance.
    out_bf16 = attention_forward(x, w_qkv_t, b_qkv, w_fc_t, b_fc,
                                 model_dim=model_dim, hidden_dim=hidden_dim)
    out_bf16 = jax.block_until_ready(out_bf16)
    assert out_bf16.shape == (batch, model_dim, seq), out_bf16.shape
    err_bf16 = jnp.max(jnp.abs(out_bf16 - ref))
    assert jnp.allclose(out_bf16, ref, atol=5e-2, rtol=5e-2), f"bf16 max abs err = {err_bf16}"

    print("KERNEL_OK")
</pallas_src>

<mosaic_0001>
module attributes {stable_mosaic.version = 11 : i64} {
  func.func @_kv_proj_kernel(%arg0: i32, %arg1: i32, %arg2: memref<1x8x32xf32, #tpu.memory_space<vmem>>, %arg3: memref<32x16xf32, #tpu.memory_space<vmem>>, %arg4: memref<32x16xf32, #tpu.memory_space<vmem>>, %arg5: memref<1x16xf32, #tpu.memory_space<vmem>>, %arg6: memref<1x16xf32, #tpu.memory_space<vmem>>, %arg7: memref<1x8x16xf32, #tpu.memory_space<vmem>>, %arg8: memref<1x8x16xf32, #tpu.memory_space<vmem>>) attributes {dimension_semantics = [#tpu.dimension_semantics<parallel>, #tpu.dimension_semantics<parallel>], iteration_bounds = array<i64: 2, 2>, scalar_prefetch = 0 : i64, scratch_operands = 0 : i64, tpu.core_type = #tpu.core_type<tc>, window_params = [{transform_indices = @transform_0, window_bounds = array<i64: 1, 8, 32>}, {pipeline_mode = #tpu.pipeline_mode<synchronous>, transform_indices = @transform_1, window_bounds = array<i64: 32, 16>}, {pipeline_mode = #tpu.pipeline_mode<synchronous>, transform_indices = @transform_2, window_bounds = array<i64: 32, 16>}, {pipeline_mode = #tpu.pipeline_mode<synchronous>, transform_indices = @transform_3, window_bounds = array<i64: 1, 16>}, {pipeline_mode = #tpu.pipeline_mode<synchronous>, transform_indices = @transform_4, window_bounds = array<i64: 1, 16>}, {transform_indices = @transform_5, window_bounds = array<i64: 1, 8, 16>}, {transform_indices = @transform_6, window_bounds = array<i64: 1, 8, 16>}]} {
    %c0 = arith.constant 0 : index
    %c0_0 = arith.constant 0 : index
    %c0_1 = arith.constant 0 : index
    %0 = vector.load %arg2[%c0, %c0_0, %c0_1] : memref<1x8x32xf32, #tpu.memory_space<vmem>>, vector<1x8x32xf32>
    %1 = vector.shape_cast %0 : vector<1x8x32xf32> to vector<8x32xf32>
    %c0_2 = arith.constant 0 : index
    %c0_3 = arith.constant 0 : index
    %2 = vector.load %arg3[%c0_2, %c0_3] : memref<32x16xf32, #tpu.memory_space<vmem>>, vector<32x16xf32>
    %cst = arith.constant dense<0.000000e+00> : vector<8x16xf32>
    %3 = tpu.matmul %1, %2, %cst {dimension_numbers = #tpu.dot_dimension_numbers<[1], [0], [0], [1], [0, 0, 1, 1], [], []>} : vector<8x32xf32>, vector<32x16xf32>, vector<8x16xf32> -> vector<8x16xf32>
    %c0_4 = arith.constant 0 : index
    %c0_5 = arith.constant 0 : index
    %4 = vector.load %arg5[%c0_4, %c0_5] : memref<1x16xf32, #tpu.memory_space<vmem>>, vector<1x16xf32>
    %5 = vector.broadcast %4 : vector<1x16xf32> to vector<8x16xf32>
    %6 = arith.addf %3, %5 : vector<8x16xf32>
    %c0_6 = arith.constant 0 : index
    %c0_7 = arith.constant 0 : index
    %7 = vector.load %arg4[%c0_6, %c0_7] : memref<32x16xf32, #tpu.memory_space<vmem>>, vector<32x16xf32>
    %cst_8 = arith.constant dense<0.000000e+00> : vector<8x16xf32>
    %8 = tpu.matmul %1, %7, %cst_8 {dimension_numbers = #tpu.dot_dimension_numbers<[1], [0], [0], [1], [0, 0, 1, 1], [], []>} : vector<8x32xf32>, vector<32x16xf32>, vector<8x16xf32> -> vector<8x16xf32>
    %c0_9 = arith.constant 0 : index
    %c0_10 = arith.constant 0 : index
    %9 = vector.load %arg6[%c0_9, %c0_10] : memref<1x16xf32, #tpu.memory_space<vmem>>, vector<1x16xf32>
    %10 = vector.broadcast %9 : vector<1x16xf32> to vector<8x16xf32>
    %11 = arith.addf %8, %10 : vector<8x16xf32>
    %c0_11 = arith.constant 0 : index
    %c0_12 = arith.constant 0 : index
    %c0_13 = arith.constant 0 : index
    %12 = vector.load %arg7[%c0_11, %c0_12, %c0_13] : memref<1x8x16xf32, #tpu.memory_space<vmem>>, vector<1x8x16xf32>
    %13 = vector.shape_cast %12 : vector<1x8x16xf32> to vector<8x16xf32>
    %14 = vector.shape_cast %6 : vector<8x16xf32> to vector<1x8x16xf32>
    tpu.vector_store %arg7[%c0_11, %c0_12, %c0_13], %14 {strides = array<i32>} : memref<1x8x16xf32, #tpu.memory_space<vmem>>, vector<1x8x16xf32>,
    %c0_14 = arith.constant 0 : index
    %c0_15 = arith.constant 0 : index
    %c0_16 = arith.constant 0 : index
    %15 = vector.load %arg8[%c0_14, %c0_15, %c0_16] : memref<1x8x16xf32, #tpu.memory_space<vmem>>, vector<1x8x16xf32>
    %16 = vector.shape_cast %15 : vector<1x8x16xf32> to vector<8x16xf32>
    %17 = vector.shape_cast %11 : vector<8x16xf32> to vector<1x8x16xf32>
    tpu.vector_store %arg8[%c0_14, %c0_15, %c0_16], %17 {strides = array<i32>} : memref<1x8x16xf32, #tpu.memory_space<vmem>>, vector<1x8x16xf32>,
    return
  }
  func.func @transform_0(%arg0: i32, %arg1: i32) -> (i32, i32, i32) {
    %c0_i32 = arith.constant 0 : i32
    %c0_i32_0 = arith.constant 0 : i32
    return %arg0, %arg1, %c0_i32 : i32, i32, i32
  }
  func.func @transform_1(%arg0: i32, %arg1: i32) -> (i32, i32) {
    %c0_i32 = arith.constant 0 : i32
    %c0_i32_0 = arith.constant 0 : i32
    %c0_i32_1 = arith.constant 0 : i32
    return %c0_i32, %c0_i32_0 : i32, i32
  }
  func.func @transform_2(%arg0: i32, %arg1: i32) -> (i32, i32) {
    %c0_i32 = arith.constant 0 : i32
    %c0_i32_0 = arith.constant 0 : i32
    %c0_i32_1 = arith.constant 0 : i32
    return %c0_i32, %c0_i32_0 : i32, i32
  }
  func.func @transform_3(%arg0: i32, %arg1: i32) -> (i32, i32) {
    %c0_i32 = arith.constant 0 : i32
    %c0_i32_0 = arith.constant 0 : i32
    %c0_i32_1 = arith.constant 0 : i32
    return %c0_i32, %c0_i32_0 : i32, i32
  }
  func.func @transform_4(%arg0: i32, %arg1: i32) -> (i32, i32) {
    %c0_i32 = arith.constant 0 : i32
    %c0_i32_0 = arith.constant 0 : i32
    %c0_i32_1 = arith.constant 0 : i32
    return %c0_i32, %c0_i32_0 : i32, i32
  }
  func.func @transform_5(%arg0: i32, %arg1: i32) -> (i32, i32, i32) {
    %c0_i32 = arith.constant 0 : i32
    %c0_i32_0 = arith.constant 0 : i32
    return %arg0, %arg1, %c0_i32 : i32, i32, i32
  }
  func.func @transform_6(%arg0: i32, %arg1: i32) -> (i32, i32, i32) {
    %c0_i32 = arith.constant 0 : i32
    %c0_i32_0 = arith.constant 0 : i32
    return %arg0, %arg1, %c0_i32 : i32, i32, i32
  }
}

</mosaic_0001>

<llo_original>
// kernel: tpu_custom_call.1
$region0: #{tpu_custom_call.1}
  #allocation0 [shape = 'u32[]', space=smem, size = 0x4, offset = 0x4, fixed_abs, tag = 'smem constant byte address 0x4 - core index']
  #allocation1 [shape = 'u32[72,128]{1,0:T(1,128)}', space=vmem, size = 0x9000, scoped, tag = 'internal scratch']
  %s0 = inlined_call_operand.vmem [shape: f32[2,16,32], index: 0, kind: input, shape index: {}]
  %s1 = inlined_call_operand.vmem [shape: f32[32,16], index: 1, kind: input, shape index: {}]
  %s2 = inlined_call_operand.vmem [shape: f32[32,16], index: 2, kind: input, shape index: {}]
  %s3 = inlined_call_operand.vmem [shape: f32[1,16], index: 3, kind: input, shape index: {}]
  %s4 = inlined_call_operand.vmem [shape: f32[1,16], index: 4, kind: input, shape index: {}]
  %s5 = inlined_call_operand.hbm [shape: f32[2,16,16], index: 5, kind: output, shape index: {0}]
  %s6 = inlined_call_operand.hbm [shape: f32[2,16,16], index: 6, kind: output, shape index: {1}]
  %7 = xla_tuple %s5, %s6
  %s8 = sld [smem:[#allocation0]]
  $region61: #{tpu_custom_call.1} parent=0
    _
  %s10 = ssub.s32 1, %s8
  %s11 = scalar_select 0, %s10, %s8
  $region1: #{tpu_custom_call.1} parent=0
    #allocation2 [shape = 'u8[8192]{0}', space=vmem, size = 0x2000, scoped, tag = 'output window, operand 0']
    #allocation3 [shape = 's32[2]{0}', space=sflag, size = 0x8, scoped, tag = 'scoped memory for tpu_custom_call.1']
    #allocation4 [shape = 'u8[8192]{0}', space=vmem, size = 0x2000, scoped, tag = 'output window, operand 1']
    #allocation5 [shape = 's32[2]{0}', space=sflag, size = 0x8, scoped, tag = 'scoped memory for tpu_custom_call.1']
    %12 = vsyncpa [#allocation3], 0
    %s13 = scalar_lea.sflag [#allocation3], 1
    %14 = vsyncpa %s13, 0
    %15 = vsyncpa [#allocation5], 0
    %s16 = scalar_lea.sflag [#allocation5], 1
    %17 = vsyncpa %s16, 0
    loop: start=0, step=1, limit=6
    $region2: #{tpu_custom_call.1} parent=1 // loop_pre_header
      _
    $region3: #{tpu_custom_call.1} parent=1 // loop_header
      %s19 = sphi 0, %s23
      %p20 = scmp.ge.s32.totalorder %s19, 6
      %s26 = sphi 0, %s38
      %s27 = sphi 0, %s34
      %s28 = sphi 0, %s26
      %s29 = sphi 0, %s27
      %s30 = sphi 0, %s28
      %s31 = sphi 0, %s29
      %s43 = sphi 0, %s45
      %s46 = sphi 0, %s43
      %s47 = sphi 0, %s46
      %s63 = sphi 0, %s47
      %s67 = sphi 0, %s67
      %s69 = sphi 0, %s67
      %s70 = sphi 0, %s69
      %s84 = sphi 0, %s70
      %s88 = sphi 0, %s88
      %s90 = sphi 0, %s88
      %s91 = sphi 0, %s90
      %s105 = sphi 0, %s91
      %s109 = sphi 0, %s109
      %s111 = sphi 0, %s109
      %s112 = sphi 0, %s111
      %s126 = sphi 0, %s112
      %s130 = sphi 0, %s130
      %s132 = sphi 0, %s130
      %s133 = sphi 0, %s132
      %s147 = sphi 0, %s133
      %s155 = sphi 0, %s157
      %s158 = sphi 0, %s155
      %s159 = sphi 0, %s158
      %s175 = sphi 0, %s159
      %s183 = sphi 0, %s185
      %s186 = sphi 0, %s183
      %s187 = sphi 0, %s186
      %s203 = sphi 0, %s187
    $region4: #{tpu_custom_call.1} parent=1 // loop_header_branch
      %22 = sbr.rel (%p20) target = $region8
    $region5: #{tpu_custom_call.1} parent=1 // loop_body
      %s24 = ssub.s32 %s19, 1
      %s25 = ssub.s32 %s19, 2
      %s32 = sadd.s32 1, %s27
      %p33 = scmp.ge.s32.totalorder %s32, 2
      %s34 = scalar_select %p33, 0, %s32
      %s35 = sadd.s32 1, %s26
      %s36 = scalar_select %p33, %s35, %s26
      %p37 = scmp.ge.s32.totalorder %s36, 2
      %s38 = scalar_select %p37, 0, %s36
      %s39 = ssub.s32 %s26, %s38
      %s40 = ssub.s32 %s27, %s34
      %s41 = sor.u32 %s39, %s40
      %p42 = scmp.eq.s32.totalorder %s41, 0
      %s44 = sadd.s32 %s43, 1
      %s45 = scalar_select %p42, %s43, %s44
      %p48 = pneg %p42
      %p49 = scmp.eq.s32.totalorder %s19, 3
      %p50 = por %p48, %p49
      %p51 = scmp.ne.s32.totalorder %s43, %s46
      %p52 = scmp.eq.s32.totalorder %s19, 0
      %p53 = por %p51, %p52
      %p54 = scmp.ne.s32.totalorder %s43, %s46
      %p55 = scmp.eq.s32.totalorder %s24, 3
      %p56 = por %p54, %p55
      %p57 = scmp.ne.s32.totalorder %s46, %s47
      %p58 = scmp.eq.s32.totalorder %s24, 0
      %p59 = por %p57, %p58
      %p60 = scmp.ne.s32.totalorder %s46, %s47
      %p61 = scmp.eq.s32.totalorder %s25, 3
      %p62 = por %p60, %p61
      %p64 = scmp.ne.s32.totalorder %s47, %s63
      %p65 = scmp.eq.s32.totalorder %s25, 0
      %p66 = por %p64, %p65
      %s68 = sadd.s32 %s67, 1
      %p71 = scmp.eq.s32.totalorder %s19, 3
      %p72 = scmp.ne.s32.totalorder %s67, %s69
      %p73 = scmp.eq.s32.totalorder %s19, 0
      %p74 = por %p72, %p73
      %p75 = scmp.ne.s32.totalorder %s67, %s69
      %p76 = scmp.eq.s32.totalorder %s24, 3
      %p77 = por %p75, %p76
      %p78 = scmp.ne.s32.totalorder %s69, %s70
      %p79 = scmp.eq.s32.totalorder %s24, 0
      %p80 = por %p78, %p79
      %p81 = scmp.ne.s32.totalorder %s69, %s70
      %p82 = scmp.eq.s32.totalorder %s25, 3
      %p83 = por %p81, %p82
      %p85 = scmp.ne.s32.totalorder %s70, %s84
      %p86 = scmp.eq.s32.totalorder %s25, 0
      %p87 = por %p85, %p86
      %s89 = sadd.s32 %s88, 1
      %p92 = scmp.eq.s32.totalorder %s19, 3
      %p93 = scmp.ne.s32.totalorder %s88, %s90
      %p94 = scmp.eq.s32.totalorder %s19, 0
      %p95 = por %p93, %p94
      %p96 = scmp.ne.s32.totalorder %s88, %s90
      %p97 = scmp.eq.s32.totalorder %s24, 3
      %p98 = por %p96, %p97
      %p99 = scmp.ne.s32.totalorder %s90, %s91
      %p100 = scmp.eq.s32.totalorder %s24, 0
      %p101 = por %p99, %p100
      %p102 = scmp.ne.s32.totalorder %s90, %s91
      %p103 = scmp.eq.s32.totalorder %s25, 3
      %p104 = por %p102, %p103
      %p106 = scmp.ne.s32.totalorder %s91, %s105
      %p107 = scmp.eq.s32.totalorder %s25, 0
      %p108 = por %p106, %p107
      %s110 = sadd.s32 %s109, 1
      %p113 = scmp.eq.s32.totalorder %s19, 3
      %p114 = scmp.ne.s32.totalorder %s109, %s111
      %p115 = scmp.eq.s32.totalorder %s19, 0
      %p116 = por %p114, %p115
      %p117 = scmp.ne.s32.totalorder %s109, %s111
      %p118 = scmp.eq.s32.totalorder %s24, 3
      %p119 = por %p117, %p118
      %p120 = scmp.ne.s32.totalorder %s111, %s112
      %p121 = scmp.eq.s32.totalorder %s24, 0
      %p122 = por %p120, %p121
      %p123 = scmp.ne.s32.totalorder %s111, %s112
      %p124 = scmp.eq.s32.totalorder %s25, 3
      %p125 = por %p123, %p124
      %p127 = scmp.ne.s32.totalorder %s112, %s126
      %p128 = scmp.eq.s32.totalorder %s25, 0
      %p129 = por %p127, %p128
      %s131 = sadd.s32 %s130, 1
      %p134 = scmp.eq.s32.totalorder %s19, 3
      %p135 = scmp.ne.s32.totalorder %s130, %s132
      %p136 = scmp.eq.s32.totalorder %s19, 0
      %p137 = por %p135, %p136
      %p138 = scmp.ne.s32.totalorder %s130, %s132
      %p139 = scmp.eq.s32.totalorder %s24, 3
      %p140 = por %p138, %p139
      %p141 = scmp.ne.s32.totalorder %s132, %s133
      %p142 = scmp.eq.s32.totalorder %s24, 0
      %p143 = por %p141, %p142
      %p144 = scmp.ne.s32.totalorder %s132, %s133
      %p145 = scmp.eq.s32.totalorder %s25, 3
      %p146 = por %p144, %p145
      %p148 = scmp.ne.s32.totalorder %s133, %s147
      %p149 = scmp.eq.s32.totalorder %s25, 0
      %p150 = por %p148, %p149
      %s151 = ssub.s32 %s26, %s38
      %s152 = ssub.s32 %s27, %s34
      %s153 = sor.u32 %s151, %s152
      %p154 = scmp.eq.s32.totalorder %s153, 0
      %s156 = sadd.s32 %s155, 1
      %s157 = scalar_select %p154, %s155, %s156
      %p160 = pneg %p154
      %p161 = scmp.eq.s32.totalorder %s19, 3
      %p162 = por %p160, %p161
      %p163 = scmp.ne.s32.totalorder %s155, %s158
      %p164 = scmp.eq.s32.totalorder %s19, 0
      %p165 = por %p163, %p164
      %p166 = scmp.ne.s32.totalorder %s155, %s158
      %p167 = scmp.eq.s32.totalorder %s24, 3
      %p168 = por %p166, %p167
      %p169 = scmp.ne.s32.totalorder %s158, %s159
      %p170 = scmp.eq.s32.totalorder %s24, 0
      %p171 = por %p169, %p170
      %p172 = scmp.ne.s32.totalorder %s158, %s159
      %p173 = scmp.eq.s32.totalorder %s25, 3
      %p174 = por %p172, %p173
      %p176 = scmp.ne.s32.totalorder %s159, %s175
      %p177 = scmp.eq.s32.totalorder %s25, 0
      %p178 = por %p176, %p177
      %s179 = ssub.s32 %s26, %s38
      %s180 = ssub.s32 %s27, %s34
      %s181 = sor.u32 %s179, %s180
      %p182 = scmp.eq.s32.totalorder %s181, 0
      %s184 = sadd.s32 %s183, 1
      %s185 = scalar_select %p182, %s183, %s184
      %p188 = pneg %p182
      %p189 = scmp.eq.s32.totalorder %s19, 3
      %p190 = por %p188, %p189
      %p191 = scmp.ne.s32.totalorder %s183, %s186
      %p192 = scmp.eq.s32.totalorder %s19, 0
      %p193 = por %p191, %p192
      %p194 = scmp.ne.s32.totalorder %s183, %s186
      %p195 = scmp.eq.s32.totalorder %s24, 3
      %p196 = por %p194, %p195
      %p197 = scmp.ne.s32.totalorder %s186, %s187
      %p198 = scmp.eq.s32.totalorder %s24, 0
      %p199 = por %p197, %p198
      %p200 = scmp.ne.s32.totalorder %s186, %s187
      %p201 = scmp.eq.s32.totalorder %s25, 3
      %p202 = por %p200, %p201
      %p204 = scmp.ne.s32.totalorder %s187, %s203
      %p205 = scmp.eq.s32.totalorder %s25, 0
      %p206 = por %p204, %p205
      %p207 = scmp.le.s32.totalorder 1, %s19
      %p208 = scmp.lt.s32.totalorder %s19, 5
      %p209 = pnand %p207, %p208
      %p210 = pneg %p209
      // Predicated region
      $region9: #{tpu_custom_call.1} parent=5 // pred_check
        _
      $region10: #{tpu_custom_call.1} parent=5 // pred_check_branch
        %212 = sbr.rel (%p209) target = $region12
      $region11: #{tpu_custom_call.1} parent=5 // pred_region
        %s213 = ssub.s32 %s19, 1
        // Predicated region
        $region13: #{tpu_custom_call.1} parent=11 // pred_check
          %p214 = pneg %p80
        $region14: #{tpu_custom_call.1} parent=11 // pred_check_branch
          %216 = sbr.rel (%p214) target = $region16
        $region15: #{tpu_custom_call.1} parent=11 // pred_region
          _
        $region16: #{tpu_custom_call.1} parent=11 // pred_fallthru
          _
        // Predicated region
        $region17: #{tpu_custom_call.1} parent=11 // pred_check
          %p217 = pneg %p101
        $region18: #{tpu_custom_call.1} parent=11 // pred_check_branch
          %219 = sbr.rel (%p217) target = $region20
        $region19: #{tpu_custom_call.1} parent=11 // pred_region
          _
        $region20: #{tpu_custom_call.1} parent=11 // pred_fallthru
          _
        // Predicated region
        $region21: #{tpu_custom_call.1} parent=11 // pred_check
          %p220 = pneg %p122
        $region22: #{tpu_custom_call.1} parent=11 // pred_check_branch
          %222 = sbr.rel (%p220) target = $region24
        $region23: #{tpu_custom_call.1} parent=11 // pred_region
          _
        $region24: #{tpu_custom_call.1} parent=11 // pred_fallthru
          _
        // Predicated region
        $region25: #{tpu_custom_call.1} parent=11 // pred_check
          %p223 = pneg %p143
        $region26: #{tpu_custom_call.1} parent=11 // pred_check_branch
          %225 = sbr.rel (%p223) target = $region28
        $region27: #{tpu_custom_call.1} parent=11 // pred_region
          _
        $region28: #{tpu_custom_call.1} parent=11 // pred_fallthru
          _
      $region12: #{tpu_custom_call.1} parent=5 // pred_fallthru
        _
      %p226 = scmp.lt.s32.totalorder %s19, 4
      // Predicated region
      $region29: #{tpu_custom_call.1} parent=5 // pred_check
        %p227 = pneg %p226
      $region30: #{tpu_custom_call.1} parent=5 // pred_check_branch
        %229 = sbr.rel (%p227) target = $region32
      $region31: #{tpu_custom_call.1} parent=5 // pred_region
        // Predicated region
        $region33: #{tpu_custom_call.1} parent=31 // pred_check
          %p230 = pneg %p53
        $region34: #{tpu_custom_call.1} parent=31 // pred_check_branch
          %232 = sbr.rel (%p230) target = $region36
        $region35: #{tpu_custom_call.1} parent=31 // pred_region
          %p233 = scmp.lt.s32.totalorder %s26, 1
          %s234 = scalar_select %p233, %s26, 1
          %p235 = scmp.lt.s32.totalorder %s27, 1
          %s236 = scalar_select %p235, %s27, 1
          %s237 = smul.addr %s234, 2
          %s238 = sadd.s32 %s236, %s237
          %s239 = smul.addr %s238, 8
          %s240 = scalar_lea.vmem %s0, %s239
        $region36: #{tpu_custom_call.1} parent=31 // pred_fallthru
          _
      $region32: #{tpu_custom_call.1} parent=5 // pred_fallthru
        _
      %p241 = scmp.le.s32.totalorder 1, %s19
      %p242 = scmp.lt.s32.totalorder %s19, 5
      %p243 = pnand %p241, %p242
      %p244 = pneg %p243
      // Predicated region
      $region37: #{tpu_custom_call.1} parent=5 // pred_check
        _
      $region38: #{tpu_custom_call.1} parent=5 // pred_check_branch
        %246 = sbr.rel (%p243) target = $region40
      $region39: #{tpu_custom_call.1} parent=5 // pred_region
        %s247 = ssub.s32 %s19, 1
        %p248 = scmp.lt.s32.totalorder %s28, 1
        %s249 = scalar_select %p248, %s28, 1
        %p250 = scmp.lt.s32.totalorder %s29, 1
        %s251 = scalar_select %p250, %s29, 1
        %s252 = smul.addr %s249, 2
        %s253 = sadd.s32 %s251, %s252
        %s254 = smul.addr %s253, 8
        %s255 = scalar_lea.vmem %s0, %s254
        %p256 = pneg %p59
        %p257 = pneg %p56
        %p258 = pneg %p80
        %p259 = pneg %p77
        %p260 = pneg %p101
        %p261 = pneg %p98
        %p262 = pneg %p122
        %p263 = pneg %p119
        %p264 = pneg %p143
        %p265 = pneg %p140
        %p266 = pneg %p171
        %p267 = pneg %p168
        %s268 = sand.u32 %s158, 1
        %s269 = scalar_lea.sflag [#allocation3], %s268
        %s270 = sand.u32 %s158, 1
        %s271 = smul.addr %s270, 8
        %s272 = scalar_lea.vmem [#allocation2], %s271
        %p273 = pneg %p199
        %p274 = pneg %p196
        %s275 = sand.u32 %s186, 1
        %s276 = scalar_lea.sflag [#allocation5], %s275
        %s277 = sand.u32 %s186, 1
        %s278 = smul.addr %s277, 8
        %s279 = scalar_lea.vmem [#allocation4], %s278
        %p280 = scmp.lt.s32.totalorder %s28, 1
        %s281 = scalar_select %p280, %s28, 1
        %p282 = scmp.lt.s32.totalorder %s29, 1
        %s283 = scalar_select %p282, %s29, 1
        %s284 = smul.addr %s281, 2
        %s285 = sadd.s32 %s283, %s284
        %s286 = smul.addr %s285, 8
        %s287 = scalar_lea.vmem %s0, %s286
        %v288 = vld [vmem:[%s287] sm:$0xff]
        %v289 = vld [vmem:[%s1] sm:$0xff]
        %v290 = vld [vmem:[%s1 + $0x8] sm:$0xff]
        %v291 = vld [vmem:[%s1 + $0x10] sm:$0xff]
        %v292 = vld [vmem:[%s1 + $0x18] sm:$0xff]
        %v293 = vld [vmem:[%s3] sm:$0x1]
        %v295 = vperm.slane %v293, 0
        %vm297 = vcmask 261120
        %v299 = vsel %vm297, %v288, 0
        %301 = vmatpush.msra.mxu0 0.0
        %302 = vmatpush.msra.mxu0 0.0
        %303 = vmatpush.msra.mxu0 0.0
        %304 = vmatpush.msra.mxu0 0.0
        %305 = vmatpush.msra.mxu0 0.0
        %306 = vmatpush.msra.mxu0 0.0
        %307 = vmatpush.msra.mxu0 0.0
        %308 = vmatpush.msra.mxu0 0.0
        %309 = vmatpush.msra.mxu0 0.0
        %310 = vmatpush.msra.mxu0 0.0
        %311 = vmatpush.msra.mxu0 0.0
        %312 = vmatpush.msra.mxu0 0.0
        %313 = vmatpush.msra.mxu0 %v292
        %314 = vmatpush.msra.mxu0 %v291
        %315 = vmatpush.msra.mxu0 %v290
        %316 = vmatpush.msra.mxu0 %v289
        %317 = vmatmul.f32.gmra.mxu0 %v299
        %v318 = vpop.f32.mrf.mxu0
        %v319 = vadd.f32 %v295, %v318
        %320 = vdwg.mxu0
        %v321 = vld [vmem:[%s2] sm:$0xff]
        %v322 = vld [vmem:[%s2 + $0x8] sm:$0xff]
        %v323 = vld [vmem:[%s2 + $0x10] sm:$0xff]
        %v324 = vld [vmem:[%s2 + $0x18] sm:$0xff]
        %v325 = vld [vmem:[%s4] sm:$0x1]
        %v327 = vperm.slane %v325, 0
        %329 = vmatpush.msra.mxu0 0.0
        %330 = vmatpush.msra.mxu0 0.0
        %331 = vmatpush.msra.mxu0 0.0
        %332 = vmatpush.msra.mxu0 0.0
        %333 = vmatpush.msra.mxu0 0.0
        %334 = vmatpush.msra.mxu0 0.0
        %335 = vmatpush.msra.mxu0 0.0
        %336 = vmatpush.msra.mxu0 0.0
        %337 = vmatpush.msra.mxu0 0.0
        %338 = vmatpush.msra.mxu0 0.0
        %339 = vmatpush.msra.mxu0 0.0
        %340 = vmatpush.msra.mxu0 0.0
        %341 = vmatpush.msra.mxu0 %v324
        %342 = vmatpush.msra.mxu0 %v323
        %343 = vmatpush.msra.mxu0 %v322
        %344 = vmatpush.msra.mxu0 %v321
        %345 = vmatmul.f32.gmra.mxu0 %v299
        %v346 = vpop.f32.mrf.mxu0
        %v347 = vadd.f32 %v327, %v346
        %348 = vdwg.mxu0
        %vm349 = vcmask 130048
        %350 = vst.msk [vmem:[%s272] sm:$0xff] %vm349, %v319
        %351 = vst.msk [vmem:[%s279] sm:$0xff] %vm349, %v347
        %s352 = sand.u32 %s158, 1
        %s353 = scalar_lea.sflag [#allocation3], %s352
        %s354 = sand.u32 %s158, 1
        %s355 = smul.addr %s354, 8
        %s356 = scalar_lea.vmem [#allocation2], %s355
        %s357 = sand.u32 %s186, 1
        %s358 = scalar_lea.sflag [#allocation5], %s357
        %s359 = sand.u32 %s186, 1
        %s360 = smul.addr %s359, 8
        %s361 = scalar_lea.vmem [#allocation4], %s360
        // Predicated region
        $region41: #{tpu_custom_call.1} parent=39 // pred_check
          %p362 = pneg %p168
        $region42: #{tpu_custom_call.1} parent=39 // pred_check_branch
          %364 = sbr.rel (%p362) target = $region44
        $region43: #{tpu_custom_call.1} parent=39 // pred_region
          %366 = vsyncadd %s353, 0
          %s367 = smul.addr %s28, 2
          %s368 = sadd.s32 %s29, %s367
          %s369 = smul.addr %s368, 8
          %s370 = scalar_lea.hbm %s5, %s369
          %s372 = sshll.u32 %s356, 4
          %s373 = int_to_ptr.vmem [resolvable:$true] %s372
          %s374 = sshll.u32 %s370, 4
          %s375 = int_to_ptr.hbm [resolvable:$true] %s374
          %377 = dma.vmem_to_hbm [thread:$0]  %s373, 128, %s375, %s353
        $region44: #{tpu_custom_call.1} parent=39 // pred_fallthru
          _
        // Predicated region
        $region45: #{tpu_custom_call.1} parent=39 // pred_check
          %p378 = pneg %p196
        $region46: #{tpu_custom_call.1} parent=39 // pred_check_branch
          %380 = sbr.rel (%p378) target = $region48
        $region47: #{tpu_custom_call.1} parent=39 // pred_region
          %382 = vsyncadd %s358, 0
          %s383 = smul.addr %s28, 2
          %s384 = sadd.s32 %s29, %s383
          %s385 = smul.addr %s384, 8
          %s386 = scalar_lea.hbm %s6, %s385
          %s388 = sshll.u32 %s361, 4
          %s389 = int_to_ptr.vmem [resolvable:$true] %s388
          %s390 = sshll.u32 %s386, 4
          %s391 = int_to_ptr.hbm [resolvable:$true] %s390
          %393 = dma.vmem_to_hbm [thread:$0]  %s389, 128, %s391, %s358
        $region48: #{tpu_custom_call.1} parent=39 // pred_fallthru
          _
      $region40: #{tpu_custom_call.1} parent=5 // pred_fallthru
        _
      %p394 = scmp.le.s32.totalorder 2, %s19
      // Predicated region
      $region49: #{tpu_custom_call.1} parent=5 // pred_check
        %p395 = pneg %p394
      $region50: #{tpu_custom_call.1} parent=5 // pred_check_branch
        %397 = sbr.rel (%p395) target = $region52
      $region51: #{tpu_custom_call.1} parent=5 // pred_region
        %s398 = ssub.s32 %s19, 2
        // Predicated region
        $region53: #{tpu_custom_call.1} parent=51 // pred_check
          %p399 = pneg %p174
        $region54: #{tpu_custom_call.1} parent=51 // pred_check_branch
          %401 = sbr.rel (%p399) target = $region56
        $region55: #{tpu_custom_call.1} parent=51 // pred_region
          %s402 = sand.u32 %s159, 1
          %s403 = scalar_lea.sflag [#allocation3], %s402
          %s404 = sand.u32 %s159, 1
          %s405 = smul.addr %s404, 8
          %s406 = scalar_lea.vmem [#allocation2], %s405
          %408 = dma.done %s403, 128
        $region56: #{tpu_custom_call.1} parent=51 // pred_fallthru
          _
        // Predicated region
        $region57: #{tpu_custom_call.1} parent=51 // pred_check
          %p409 = pneg %p202
        $region58: #{tpu_custom_call.1} parent=51 // pred_check_branch
          %411 = sbr.rel (%p409) target = $region60
        $region59: #{tpu_custom_call.1} parent=51 // pred_region
          %s412 = sand.u32 %s187, 1
          %s413 = scalar_lea.sflag [#allocation5], %s412
          %s414 = sand.u32 %s187, 1
          %s415 = smul.addr %s414, 8
          %s416 = scalar_lea.vmem [#allocation4], %s415
          %418 = dma.done %s413, 128
        $region60: #{tpu_custom_call.1} parent=51 // pred_fallthru
          _
      $region52: #{tpu_custom_call.1} parent=5 // pred_fallthru
        _
    $region6: #{tpu_custom_call.1} parent=1 // loop_footer
      %s23 = sadd.s32 1, %s19
    $region7: #{tpu_custom_call.1} parent=1 // loop_footer_branch
      %18 = sbr.rel target = $region3
    $region8: #{tpu_custom_call.1} parent=1 // loop_exit
      _
    %419 = vsyncpa [#allocation3], 1
    %s420 = scalar_lea.sflag [#allocation3], 1
    %421 = vsyncpa %s420, 1
    %422 = vsyncpa [#allocation5], 1
    %s423 = scalar_lea.sflag [#allocation5], 1
    %424 = vsyncpa %s423, 1

</llo_original>
